<compile_context>
chip_gen: v5e
topology: v5e:2x2
jax: 0.10.0
libtpu: 0.0.40
codegen_flags: <defaults>
</compile_context>

<pallas_src>
import functools

import jax
import jax.numpy as jnp
from jax import lax
from jax.experimental import pallas as pl
from jax.experimental.pallas import tpu as pltpu


def _ce_kernel(pred_ref, gt_ref, nll_ref, *, total_n, tile_m):
    """Writes per-row negative log-likelihood for this row tile (tail rows -> 0)."""
    i = pl.program_id(0)

    logits = pred_ref[...].astype(jnp.float32)                   # (TM, C) f32
    gt = gt_ref[...]                                             # (TM, 1) int32

    # Numerically-stable log-sum-exp per row (exp/log go to the EUP slot).
    m = jnp.max(logits, axis=-1, keepdims=True)                  # (TM, 1)
    lse = m + jnp.log(jnp.sum(jnp.exp(logits - m), axis=-1, keepdims=True))

    # Gather target logit via one-hot mask (no dynamic gather on TPU vector path).
    # NOTE: out-of-range gt silently contributes a 0 target logit (torch would raise).
    col = lax.broadcasted_iota(jnp.int32, logits.shape, 1)
    tgt = jnp.sum(jnp.where(col == gt, logits, 0.0), axis=-1, keepdims=True)

    # Mask rows past the true N (ragged last block). jnp.where (not multiply) so
    # garbage / NaN in the un-DMA'd tail rows cannot leak into the result.
    row = lax.broadcasted_iota(jnp.int32, (tile_m, 1), 0) + i * tile_m
    nll_ref[...] = jnp.where(row < total_n, lse - tgt, 0.0)


def cross_entropy_loss(pred, gt, *, vmem_limit_mb=48):
    """pred: (N, C) float logits, gt: (N,) integer class ids. Returns scalar f32 mean CE."""
    N, C = pred.shape
    itemsize = jnp.dtype(pred.dtype).itemsize
    pack = max(8, 32 // itemsize)           # sublane packing: 8 f32, 16 bf16, 32 int8

    # Row tile sized against a ~8 MiB per-buffer pred budget (double-buffered by
    # the auto-pipeline), capped at 2048 rows; amortizes the ~0.35 us per-step
    # grid overhead while staying well inside the 48 MiB scoped-VMEM limit.
    pred_buf_budget = 8 * 1024 * 1024
    tile_m = pred_buf_budget // (itemsize * C)
    tile_m = max(pack, min(2048, tile_m))
    tile_m = (tile_m // pack) * pack
    # Keep tile_m <= N so only the *last* grid block is ragged (never block > dim).
    if N >= pack:
        tile_m = min(tile_m, (N // pack) * pack)
    else:
        tile_m = N                          # full-dim block: always legal
    # TODO(synk): for vocab-scale C (>= 32K) add a second grid axis over C with an
    # online-LSE (flash-softmax style) update instead of one full (tile_m, C) block.

    num_blocks = pl.cdiv(N, tile_m)

    gt2d = gt.astype(jnp.int32).reshape(N, 1)

    kernel = functools.partial(_ce_kernel, total_n=N, tile_m=tile_m)

    nll = pl.pallas_call(
        kernel,
        out_shape=jax.ShapeDtypeStruct((N, 1), jnp.float32),
        grid_spec=pltpu.PrefetchScalarGridSpec(
            num_scalar_prefetch=0,
            grid=(num_blocks,),
            in_specs=[
                pl.BlockSpec((tile_m, C), lambda i: (i, 0)),   # logits tile
                pl.BlockSpec((tile_m, 1), lambda i: (i, 0)),   # gt tile (tiny DMA)
            ],
            out_specs=pl.BlockSpec((tile_m, 1), lambda i: (i, 0)),
        ),
        compiler_params=pltpu.CompilerParams(
            dimension_semantics=("parallel",),                 # each block written once
            vmem_limit_bytes=vmem_limit_mb * 1024 * 1024,
        ),
    )(pred, gt2d)

    # Final reduce + 'mean' normalization in the wrapper (cheap, avoids a
    # serially-revisited scalar accumulator inside the kernel).
    return jnp.sum(nll[:, 0]) / jnp.float32(N)


def _reference_ce(pred, gt):
    logits = pred.astype(jnp.float32)
    lse = jax.nn.logsumexp(logits, axis=-1)
    tgt = jnp.take_along_axis(logits, gt.astype(jnp.int32)[:, None], axis=-1)[:, 0]
    return jnp.mean(lse - tgt)


if __name__ == "__main__":
    key = jax.random.PRNGKey(0)
    kp, kg, kp2, kg2, kp3, kg3 = jax.random.split(key, 6)

    # Case 1: aligned N (single full block).
    N, C = 16, 32
    pred = jax.random.normal(kp, (N, C), dtype=jnp.float32)
    gt = jax.random.randint(kg, (N,), 0, C, dtype=jnp.int32)
    loss = cross_entropy_loss(pred, gt)
    jax.block_until_ready(loss)
    ref = _reference_ce(pred, gt)
    assert jnp.allclose(loss, ref, rtol=1e-5, atol=1e-5), (loss, ref)

    # Case 2: ragged N (exercises the partial-last-block masking path, 2 blocks).
    N2, C2 = 13, 32
    pred2 = jax.random.normal(kp2, (N2, C2), dtype=jnp.float32)
    gt2 = jax.random.randint(kg2, (N2,), 0, C2, dtype=jnp.int32)
    loss2 = cross_entropy_loss(pred2, gt2)
    jax.block_until_ready(loss2)
    ref2 = _reference_ce(pred2, gt2)
    assert jnp.allclose(loss2, ref2, rtol=1e-5, atol=1e-5), (loss2, ref2)

    # Case 3: bf16 logits, ragged N (exercises 16-row sublane packing + ragged tail).
    N3, C3 = 24, 64
    pred3 = jax.random.normal(kp3, (N3, C3), dtype=jnp.float32).astype(jnp.bfloat16)
    gt3 = jax.random.randint(kg3, (N3,), 0, C3, dtype=jnp.int32)
    loss3 = cross_entropy_loss(pred3, gt3)
    jax.block_until_ready(loss3)
    ref3 = _reference_ce(pred3, gt3)
    assert jnp.allclose(loss3, ref3, rtol=1e-4, atol=1e-4), (loss3, ref3)

    print("KERNEL_OK")
</pallas_src>

<mosaic_0001>
module attributes {stable_mosaic.version = 11 : i64} {
  func.func @_ce_kernel(%arg0: i32, %arg1: memref<16x32xf32, #tpu.memory_space<vmem>>, %arg2: memref<16x1xi32, #tpu.memory_space<vmem>>, %arg3: memref<16x1xf32, #tpu.memory_space<vmem>>) attributes {dimension_semantics = [#tpu.dimension_semantics<parallel>], iteration_bounds = array<i64: 1>, scalar_prefetch = 0 : i64, scratch_operands = 0 : i64, tpu.core_type = #tpu.core_type<tc>, window_params = [{transform_indices = @transform_0, window_bounds = array<i64: 16, 32>}, {transform_indices = @transform_1, window_bounds = array<i64: 16, 1>}, {transform_indices = @transform_2, window_bounds = array<i64: 16, 1>}]} {
    %c0 = arith.constant 0 : index
    %c0_0 = arith.constant 0 : index
    %0 = vector.load %arg1[%c0, %c0_0] : memref<16x32xf32, #tpu.memory_space<vmem>>, vector<16x32xf32>
    %c0_1 = arith.constant 0 : index
    %c0_2 = arith.constant 0 : index
    %1 = vector.load %arg2[%c0_1, %c0_2] : memref<16x1xi32, #tpu.memory_space<vmem>>, vector<16x1xi32>
    %cst = arith.constant dense<0xFF800000> : vector<16xf32>
    %2 = vector.multi_reduction <maximumf>, %0, %cst [1] : vector<16x32xf32> to vector<16xf32>
    %3 = vector.shape_cast %2 : vector<16xf32> to vector<16x1xf32>
    %4 = vector.broadcast %3 : vector<16x1xf32> to vector<16x32xf32>
    %5 = arith.subf %0, %4 : vector<16x32xf32>
    %6 = math.exp %5 : vector<16x32xf32>
    %cst_3 = arith.constant dense<0.000000e+00> : vector<16xf32>
    %7 = vector.multi_reduction <add>, %6, %cst_3 [1] : vector<16x32xf32> to vector<16xf32>
    %8 = vector.shape_cast %7 : vector<16xf32> to vector<16x1xf32>
    %9 = math.log %8 : vector<16x1xf32>
    %10 = arith.addf %3, %9 : vector<16x1xf32>
    %11 = tpu.iota {dimensions = array<i32: 1>} : vector<16x32xi32>
    %12 = vector.broadcast %1 : vector<16x1xi32> to vector<16x32xi32>
    %13 = arith.cmpi eq, %11, %12 : vector<16x32xi32>
    %cst_4 = arith.constant 0.000000e+00 : f32
    %14 = vector.broadcast %cst_4 : f32 to vector<16x32xf32>
    %15 = arith.select %13, %0, %14 : vector<16x32xi1>, vector<16x32xf32>
    %cst_5 = arith.constant dense<0.000000e+00> : vector<16xf32>
    %16 = vector.multi_reduction <add>, %15, %cst_5 [1] : vector<16x32xf32> to vector<16xf32>
    %17 = vector.shape_cast %16 : vector<16xf32> to vector<16x1xf32>
    %18 = tpu.iota {dimensions = array<i32: 0>} : vector<16x1xi32>
    %c16_i32 = arith.constant 16 : i32
    %19 = arith.muli %arg0, %c16_i32 : i32
    %20 = vector.broadcast %19 : i32 to vector<16x1xi32>
    %21 = arith.addi %18, %20 : vector<16x1xi32>
    %c16_i32_6 = arith.constant 16 : i32
    %22 = vector.broadcast %c16_i32_6 : i32 to vector<16x1xi32>
    %23 = arith.cmpi slt, %21, %22 : vector<16x1xi32>
    %24 = arith.subf %10, %17 : vector<16x1xf32>
    %cst_7 = arith.constant 0.000000e+00 : f32
    %25 = vector.broadcast %cst_7 : f32 to vector<16x1xf32>
    %26 = arith.select %23, %24, %25 : vector<16x1xi1>, vector<16x1xf32>
    %c0_8 = arith.constant 0 : index
    %c0_9 = arith.constant 0 : index
    %27 = vector.load %arg3[%c0_8, %c0_9] : memref<16x1xf32, #tpu.memory_space<vmem>>, vector<16x1xf32>
    tpu.vector_store %arg3[%c0_8, %c0_9], %26 {strides = array<i32>} : memref<16x1xf32, #tpu.memory_space<vmem>>, vector<16x1xf32>,
    return
  }
  func.func @transform_0(%arg0: i32) -> (i32, i32) {
    %c0_i32 = arith.constant 0 : i32
    %c0_i32_0 = arith.constant 0 : i32
    return %arg0, %c0_i32 : i32, i32
  }
  func.func @transform_1(%arg0: i32) -> (i32, i32) {
    %c0_i32 = arith.constant 0 : i32
    %c0_i32_0 = arith.constant 0 : i32
    return %arg0, %c0_i32 : i32, i32
  }
  func.func @transform_2(%arg0: i32) -> (i32, i32) {
    %c0_i32 = arith.constant 0 : i32
    %c0_i32_0 = arith.constant 0 : i32
    return %arg0, %c0_i32 : i32, i32
  }
}

</mosaic_0001>

<llo_original>
// kernel: tpu_custom_call.1
$region0: #{tpu_custom_call.1}
  #allocation0 [shape = 'u32[]', space=smem, size = 0x4, offset = 0x4, fixed_abs, tag = 'smem constant byte address 0x4 - core index']
  #allocation1 [shape = 'u32[72,128]{1,0:T(1,128)}', space=vmem, size = 0x9000, scoped, tag = 'internal scratch']
  %s0 = inlined_call_operand.vmem [shape: f32[16,32], index: 0, kind: input, shape index: {}]
  %s1 = inlined_call_operand.vmem [shape: s32[16,1], index: 1, kind: input, shape index: {}]
  %s2 = inlined_call_operand.vmem [shape: f32[16,1], index: 2, kind: output, shape index: {}]
  %s3 = sld [smem:[#allocation0]]
  $region18: #{tpu_custom_call.1} parent=0
    _
  %s5 = ssub.s32 1, %s3
  %s6 = scalar_select 0, %s5, %s3
  // Predicated region
  $region2: #{tpu_custom_call.1} parent=0 // pred_check
    _
  $region3: #{tpu_custom_call.1} parent=0 // pred_check_branch
    %8 = sbr.rel (0) target = $region5
  $region4: #{tpu_custom_call.1} parent=0 // pred_region
    _
  $region5: #{tpu_custom_call.1} parent=0 // pred_fallthru
    _
  // Predicated region
  $region6: #{tpu_custom_call.1} parent=0 // pred_check
    _
  $region7: #{tpu_custom_call.1} parent=0 // pred_check_branch
    %10 = sbr.rel (0) target = $region9
  $region8: #{tpu_custom_call.1} parent=0 // pred_region
    _
  $region9: #{tpu_custom_call.1} parent=0 // pred_fallthru
    _
  %v11 = vld [vmem:[%s0] sm:$0xff]
  %v12 = vld [vmem:[%s0 + $0x8] sm:$0xff]
  %v13 = vld [vmem:[%s1] sm:$0xff]
  %v14 = vld [vmem:[%s1 + $0x8] sm:$0xff]
  %vm15 = vcmask 261120
  %v16 = vsel %vm15, %v11, -inf
  %17 = vmax.xlane.f32.xlu0 %v16
  %v18 = vpop.xlane.xlu0 %17
  %v19 = vsel %vm15, %v12, -inf
  %20 = vmax.xlane.f32.xlu0 %v19
  %v21 = vpop.xlane.xlu0 %20
  %v22 = vsub.f32 %v11, %v18
  %v23 = vsub.f32 %v12, %v21
  %v24 = vmul.f32 %v22, 1.442695
  %v25 = vpow.pop %v24
  %v26 = vmul.f32 %v23, 1.442695
  %v27 = vpow.pop %v26
  %v28 = vsel %vm15, %v25, 0.0
  %29 = vadd.xlane.f32.xlu0 %v28
  %v30 = vpop.xlane.xlu0 %29
  %v31 = vsel %vm15, %v27, 0.0
  %32 = vadd.xlane.f32.xlu0 %v31
  %v33 = vpop.xlane.xlu0 %32
  %v34 = vlog2.pop %v30
  %v35 = vmul.f32 %v34, 0.6931472
  %v36 = vlog2.pop %v33
  %v37 = vmul.f32 %v36, 0.6931472
  %v38 = vadd.f32 %v18, %v35
  %v39 = vadd.f32 %v21, %v37
  %v40 = vlaneseq
  %v41 = vand.u32 %v40, 127
  %42 = vset.pattern.permute.xlu0 0
  %43 = vperm.xlu0 %42, %v13
  %v44 = vpop.permute.xlu0 %43
  %45 = vset.pattern.permute.xlu0 0
  %46 = vperm.xlu0 %45, %v14
  %v47 = vpop.permute.xlu0 %46
  %vm48 = vcmp.eq.s32.totalorder %v41, %v44
  %vm49 = vcmp.eq.s32.totalorder %v41, %v47
  %v50 = vsel %vm48, %v11, 0.0
  %v51 = vsel %vm49, %v12, 0.0
  %v52 = vsel %vm15, %v50, 0.0
  %53 = vadd.xlane.f32.xlu0 %v52
  %v54 = vpop.xlane.xlu0 %53
  %v55 = vsel %vm15, %v51, 0.0
  %56 = vadd.xlane.f32.xlu0 %v55
  %v57 = vpop.xlane.xlu0 %56
  %v58 = vlaneseq
  %v59 = vshrl.u32 %v58, 7
  %v60 = vadd.s32 %v59, 8
  %s61 = smul.u32 0, 16
  %v62 = vstv %s61
  %v63 = vadd.s32 %v59, %v62
  %v64 = vadd.s32 %v60, %v62
  %vm65 = vcmp.lt.s32.totalorder %v63, 16
  %vm66 = vcmp.lt.s32.totalorder %v64, 16
  %v67 = vsub.f32 %v38, %v54
  %v68 = vsub.f32 %v39, %v57
  %v69 = vsel %vm65, %v67, 0.0
  %v70 = vsel %vm66, %v68, 0.0
  %vm71 = vcmask 7168
  %72 = vst.msk [vmem:[%s2] sm:$0xff] %vm71, %v69
  %73 = vst.msk [vmem:[%s2 + $0x8] sm:$0xff] %vm71, %v70
  // Predicated region
  $region10: #{tpu_custom_call.1} parent=0 // pred_check
    _
  $region11: #{tpu_custom_call.1} parent=0 // pred_check_branch
    %75 = sbr.rel (0) target = $region13
  $region12: #{tpu_custom_call.1} parent=0 // pred_region
    _
  $region13: #{tpu_custom_call.1} parent=0 // pred_fallthru
    _
  // Predicated region
  $region14: #{tpu_custom_call.1} parent=0 // pred_check
    _
  $region15: #{tpu_custom_call.1} parent=0 // pred_check_branch
    %77 = sbr.rel (0) target = $region17
  $region16: #{tpu_custom_call.1} parent=0 // pred_region
    _
  $region17: #{tpu_custom_call.1} parent=0 // pred_fallthru
    _

</llo_original>
